<compile_context>
chip_gen: v6e
topology: v6e:2x2x1
jax: 0.10.0
libtpu: 0.0.40
codegen_flags: <defaults>
</compile_context>

<pallas_src>
import jax
import jax.numpy as jnp
from jax import lax
from jax.experimental import pallas as pl
from jax.experimental.pallas import tpu as pltpu

BN_EPS = 1e-5  # nn.BatchNorm2d default


def _make_blocknet_kernel(inv_m):
    """inv_m = 1 / (N*H*W), baked in as a compile-time constant."""

    def kernel(x_ref, sup_ref, sdn_ref, w_ref, pool_ref, g_ref, b_ref, o_ref):
        # x_ref:    (R, L)      activations, R = N*H rows, L = W*C lanes
        # sup/sdn:  (R, R)      dy = -1 / +1 row-shift matrices (zero-pad aware)
        # w_ref:    (3L, L)     banded conv weights (dx taps + W padding folded in)
        # pool_ref: (L, L)      per-channel pool+broadcast matrix over lanes
        # g/b_ref:  (1, L)      gamma / beta replicated across the W lane blocks
        def conv_bn_relu(x):
            # dy shifts as tiny MXU matmuls (encode H zero-padding + image bounds)
            x_up = jnp.dot(sup_ref[...], x, preferred_element_type=jnp.float32)
            x_dn = jnp.dot(sdn_ref[...], x, preferred_element_type=jnp.float32)
            # Single K = 3*W*C matmul against the banded weights.
            x3 = jnp.concatenate([x_up, x, x_dn], axis=1)            # (R, 3L)
            a = jnp.dot(x3, w_ref[...],
                        preferred_element_type=jnp.float32)          # (R, L)

            # Train-mode BatchNorm, folded into one per-lane FMA.
            sum_l = jnp.sum(a, axis=0, keepdims=True)                # (1, L)
            mean = jnp.dot(sum_l, pool_ref[...],
                           preferred_element_type=jnp.float32) * inv_m
            d = a - mean                                             # centered
            var = jnp.dot(jnp.sum(d * d, axis=0, keepdims=True), pool_ref[...],
                          preferred_element_type=jnp.float32) * inv_m
            scale = g_ref[...] * lax.rsqrt(var + BN_EPS)             # (1, L)
            shift = b_ref[...] - mean * scale                        # (1, L)
            return jnp.maximum(a * scale + shift, 0.0)               # FMA + ReLU

        x = x_ref[...]
        h = conv_bn_relu(x)
        h = conv_bn_relu(h)          # same conv / bnorm params, as in the module
        o_ref[...] = h + x           # residual

    return kernel


def blocknet_forward(x_nchw, w_pt, bias, gamma, beta):
    """BlockNet forward. x_nchw: (N,C,H,W), w_pt: (Cout,Cin,3,3)."""
    del bias  # cancels exactly under training-mode BatchNorm (see kernel notes)
    N, C, H, W = x_nchw.shape
    R, L = N * H, W * C
    f32 = jnp.float32

    # NCHW -> lane-dense (N*H, W*C): lane index = w*C + c.
    x2d = jnp.transpose(x_nchw, (0, 2, 3, 1)).astype(f32).reshape(R, L)

    # Banded conv matrix (3*W*C, W*C): rows indexed (dy, w_in, ci), cols (w_out, co).
    w = jnp.transpose(w_pt, (2, 3, 1, 0)).astype(f32)          # (3, 3, Cin, Cout)
    wo = jnp.arange(W)
    # E[dx, w_in, w_out] = 1  iff  w_in == w_out + dx - 1  (zero padding along W)
    E = (wo[None, :, None] == wo[None, None, :] + jnp.arange(3)[:, None, None] - 1)
    wbig = jnp.einsum("xab,yxio->yaibo", E.astype(f32), w).reshape(3 * L, L)

    # Row-shift matrices for dy = 0 / 2 (zero padding along H + image boundaries).
    r = jnp.arange(R)
    sup = ((r[:, None] - 1 == r[None, :]) & (r[:, None] % H != 0)).astype(f32)
    sdn = ((r[:, None] + 1 == r[None, :]) & (r[:, None] % H != H - 1)).astype(f32)

    # Per-channel pool + broadcast over lanes: P[l, l'] = 1 iff l % C == l' % C.
    lane = jnp.arange(L)
    pool = (lane[:, None] % C == lane[None, :] % C).astype(f32)

    g_lane = jnp.tile(gamma.astype(f32), W).reshape(1, L)
    b_lane = jnp.tile(beta.astype(f32), W).reshape(1, L)

    inv_m = 1.0 / float(N * H * W)

    per_conv = 2 * R * (3 * L) * L + 2 * (2 * R * R * L) + 2 * (2 * L * L)
    cost = pl.CostEstimate(
        flops=2 * per_conv,
        transcendentals=2 * L,
        bytes_accessed=4 * (2 * R * L + 3 * L * L + L * L + 2 * R * R + 2 * L),
    )

    # TODO(synk): for large N*H*W*C (v7x: 64 MiB VMEM, 2 TCs) add a grid over the
    # row axis with a two-pass BN (stats pass + normalize pass) and mark it
    # "parallel"; optionally cast matmul operands to bf16 on v6e/v7x.
    out2d = pl.pallas_call(
        _make_blocknet_kernel(inv_m),
        out_shape=jax.ShapeDtypeStruct((R, L), f32),
        in_specs=[pl.BlockSpec(memory_space=pltpu.MemorySpace.VMEM)] * 7,
        out_specs=pl.BlockSpec(memory_space=pltpu.MemorySpace.VMEM),
        cost_estimate=cost,
    )(x2d, sup, sdn, wbig, pool, g_lane, b_lane)

    # (N*H, W*C) -> NCHW
    return jnp.transpose(out2d.reshape(N, H, W, C), (0, 3, 1, 2))


def blocknet_reference(x_nchw, w_pt, bias, gamma, beta):
    """Pure-JAX reference matching the PyTorch module (training-mode BN)."""
    def conv_bn_relu(x):
        y = lax.conv_general_dilated(
            x, w_pt, window_strides=(1, 1), padding=((1, 1), (1, 1)),
            dimension_numbers=("NCHW", "OIHW", "NCHW"))
        y = y + bias[None, :, None, None]
        mean = jnp.mean(y, axis=(0, 2, 3), keepdims=True)
        var = jnp.mean((y - mean) ** 2, axis=(0, 2, 3), keepdims=True)
        y = (y - mean) * lax.rsqrt(var + BN_EPS)
        y = y * gamma[None, :, None, None] + beta[None, :, None, None]
        return jnp.maximum(y, 0.0)

    h = conv_bn_relu(x_nchw)
    h = conv_bn_relu(h)
    return h + x_nchw


if __name__ == "__main__":
    # BlockNet(i=0): num_channels = 16 * 2**0 = 16
    N, C, H, W = 2, 16, 8, 8

    key = jax.random.PRNGKey(0)
    kx, kw, kb, kg, kbeta = jax.random.split(key, 5)
    x = jax.random.normal(kx, (N, C, H, W), jnp.float32)
    w = jax.random.normal(kw, (C, C, 3, 3), jnp.float32) * 0.1   # (Cout, Cin, 3, 3)
    bias = jax.random.normal(kb, (C,), jnp.float32) * 0.1
    gamma = 1.0 + 0.1 * jax.random.normal(kg, (C,), jnp.float32)
    beta = 0.1 * jax.random.normal(kbeta, (C,), jnp.float32)

    out = blocknet_forward(x, w, bias, gamma, beta)
    out = jax.block_until_ready(out)

    ref = blocknet_reference(x, w, bias, gamma, beta)
    assert out.shape == (N, C, H, W)
    assert jnp.allclose(out, ref, atol=1e-4, rtol=1e-4), "mismatch vs reference"

    print("KERNEL_OK")
</pallas_src>

<mosaic_0001>
module attributes {stable_mosaic.version = 11 : i64} {
  func.func @kernel(%arg0: memref<16x128xf32, #tpu.memory_space<vmem>>, %arg1: memref<16x16xf32, #tpu.memory_space<vmem>>, %arg2: memref<16x16xf32, #tpu.memory_space<vmem>>, %arg3: memref<384x128xf32, #tpu.memory_space<vmem>>, %arg4: memref<128x128xf32, #tpu.memory_space<vmem>>, %arg5: memref<1x128xf32, #tpu.memory_space<vmem>>, %arg6: memref<1x128xf32, #tpu.memory_space<vmem>>, %arg7: memref<16x128xf32, #tpu.memory_space<vmem>>) attributes {dimension_semantics = [], scalar_prefetch = 0 : i64, scratch_operands = 0 : i64, tpu.core_type = #tpu.core_type<tc>} {
    %c0 = arith.constant 0 : index
    %c0_0 = arith.constant 0 : index
    %0 = vector.load %arg0[%c0, %c0_0] : memref<16x128xf32, #tpu.memory_space<vmem>>, vector<16x128xf32>
    %c0_1 = arith.constant 0 : index
    %c0_2 = arith.constant 0 : index
    %1 = vector.load %arg1[%c0_1, %c0_2] : memref<16x16xf32, #tpu.memory_space<vmem>>, vector<16x16xf32>
    %cst = arith.constant dense<0.000000e+00> : vector<16x128xf32>
    %2 = tpu.matmul %1, %0, %cst {dimension_numbers = #tpu.dot_dimension_numbers<[1], [0], [0], [1], [0, 0, 1, 1], [], []>} : vector<16x16xf32>, vector<16x128xf32>, vector<16x128xf32> -> vector<16x128xf32>
    %c0_3 = arith.constant 0 : index
    %c0_4 = arith.constant 0 : index
    %3 = vector.load %arg2[%c0_3, %c0_4] : memref<16x16xf32, #tpu.memory_space<vmem>>, vector<16x16xf32>
    %cst_5 = arith.constant dense<0.000000e+00> : vector<16x128xf32>
    %4 = tpu.matmul %3, %0, %cst_5 {dimension_numbers = #tpu.dot_dimension_numbers<[1], [0], [0], [1], [0, 0, 1, 1], [], []>} : vector<16x16xf32>, vector<16x128xf32>, vector<16x128xf32> -> vector<16x128xf32>
    %5 = tpu.concatenate %2, %0, %4 in 1 : vector<16x128xf32>, vector<16x128xf32>, vector<16x128xf32> -> vector<16x384xf32>
    %c0_6 = arith.constant 0 : index
    %c0_7 = arith.constant 0 : index
    %6 = vector.load %arg3[%c0_6, %c0_7] : memref<384x128xf32, #tpu.memory_space<vmem>>, vector<384x128xf32>
    %cst_8 = arith.constant dense<0.000000e+00> : vector<16x128xf32>
    %7 = tpu.matmul %5, %6, %cst_8 {dimension_numbers = #tpu.dot_dimension_numbers<[1], [0], [0], [1], [0, 0, 1, 1], [], []>} : vector<16x384xf32>, vector<384x128xf32>, vector<16x128xf32> -> vector<16x128xf32>
    %cst_9 = arith.constant dense<0.000000e+00> : vector<128xf32>
    %8 = vector.multi_reduction <add>, %7, %cst_9 [0] : vector<16x128xf32> to vector<128xf32>
    %9 = vector.shape_cast %8 : vector<128xf32> to vector<1x128xf32>
    %c0_10 = arith.constant 0 : index
    %c0_11 = arith.constant 0 : index
    %10 = vector.load %arg4[%c0_10, %c0_11] : memref<128x128xf32, #tpu.memory_space<vmem>>, vector<128x128xf32>
    %cst_12 = arith.constant dense<0.000000e+00> : vector<1x128xf32>
    %11 = tpu.matmul %9, %10, %cst_12 {dimension_numbers = #tpu.dot_dimension_numbers<[1], [0], [0], [1], [0, 0, 1, 1], [], []>} : vector<1x128xf32>, vector<128x128xf32>, vector<1x128xf32> -> vector<1x128xf32>
    %cst_13 = arith.constant 7.812500e-03 : f32
    %12 = vector.broadcast %cst_13 : f32 to vector<1x128xf32>
    %13 = arith.mulf %11, %12 : vector<1x128xf32>
    %14 = vector.broadcast %13 : vector<1x128xf32> to vector<16x128xf32>
    %15 = arith.subf %7, %14 : vector<16x128xf32>
    %16 = arith.mulf %15, %15 : vector<16x128xf32>
    %cst_14 = arith.constant dense<0.000000e+00> : vector<128xf32>
    %17 = vector.multi_reduction <add>, %16, %cst_14 [0] : vector<16x128xf32> to vector<128xf32>
    %18 = vector.shape_cast %17 : vector<128xf32> to vector<1x128xf32>
    %c0_15 = arith.constant 0 : index
    %c0_16 = arith.constant 0 : index
    %19 = vector.load %arg4[%c0_15, %c0_16] : memref<128x128xf32, #tpu.memory_space<vmem>>, vector<128x128xf32>
    %cst_17 = arith.constant dense<0.000000e+00> : vector<1x128xf32>
    %20 = tpu.matmul %18, %19, %cst_17 {dimension_numbers = #tpu.dot_dimension_numbers<[1], [0], [0], [1], [0, 0, 1, 1], [], []>} : vector<1x128xf32>, vector<128x128xf32>, vector<1x128xf32> -> vector<1x128xf32>
    %cst_18 = arith.constant 7.812500e-03 : f32
    %21 = vector.broadcast %cst_18 : f32 to vector<1x128xf32>
    %22 = arith.mulf %20, %21 : vector<1x128xf32>
    %c0_19 = arith.constant 0 : index
    %c0_20 = arith.constant 0 : index
    %23 = vector.load %arg5[%c0_19, %c0_20] : memref<1x128xf32, #tpu.memory_space<vmem>>, vector<1x128xf32>
    %cst_21 = arith.constant 9.99999974E-6 : f32
    %24 = vector.broadcast %cst_21 : f32 to vector<1x128xf32>
    %25 = arith.addf %22, %24 : vector<1x128xf32>
    %26 = math.rsqrt %25 : vector<1x128xf32>
    %27 = arith.mulf %23, %26 : vector<1x128xf32>
    %c0_22 = arith.constant 0 : index
    %c0_23 = arith.constant 0 : index
    %28 = vector.load %arg6[%c0_22, %c0_23] : memref<1x128xf32, #tpu.memory_space<vmem>>, vector<1x128xf32>
    %29 = arith.mulf %13, %27 : vector<1x128xf32>
    %30 = arith.subf %28, %29 : vector<1x128xf32>
    %31 = vector.broadcast %27 : vector<1x128xf32> to vector<16x128xf32>
    %32 = arith.mulf %7, %31 : vector<16x128xf32>
    %33 = vector.broadcast %30 : vector<1x128xf32> to vector<16x128xf32>
    %34 = arith.addf %32, %33 : vector<16x128xf32>
    %cst_24 = arith.constant 0.000000e+00 : f32
    %35 = vector.broadcast %cst_24 : f32 to vector<16x128xf32>
    %36 = arith.maximumf %34, %35 : vector<16x128xf32>
    %c0_25 = arith.constant 0 : index
    %c0_26 = arith.constant 0 : index
    %37 = vector.load %arg1[%c0_25, %c0_26] : memref<16x16xf32, #tpu.memory_space<vmem>>, vector<16x16xf32>
    %cst_27 = arith.constant dense<0.000000e+00> : vector<16x128xf32>
    %38 = tpu.matmul %37, %36, %cst_27 {dimension_numbers = #tpu.dot_dimension_numbers<[1], [0], [0], [1], [0, 0, 1, 1], [], []>} : vector<16x16xf32>, vector<16x128xf32>, vector<16x128xf32> -> vector<16x128xf32>
    %c0_28 = arith.constant 0 : index
    %c0_29 = arith.constant 0 : index
    %39 = vector.load %arg2[%c0_28, %c0_29] : memref<16x16xf32, #tpu.memory_space<vmem>>, vector<16x16xf32>
    %cst_30 = arith.constant dense<0.000000e+00> : vector<16x128xf32>
    %40 = tpu.matmul %39, %36, %cst_30 {dimension_numbers = #tpu.dot_dimension_numbers<[1], [0], [0], [1], [0, 0, 1, 1], [], []>} : vector<16x16xf32>, vector<16x128xf32>, vector<16x128xf32> -> vector<16x128xf32>
    %41 = tpu.concatenate %38, %36, %40 in 1 : vector<16x128xf32>, vector<16x128xf32>, vector<16x128xf32> -> vector<16x384xf32>
    %c0_31 = arith.constant 0 : index
    %c0_32 = arith.constant 0 : index
    %42 = vector.load %arg3[%c0_31, %c0_32] : memref<384x128xf32, #tpu.memory_space<vmem>>, vector<384x128xf32>
    %cst_33 = arith.constant dense<0.000000e+00> : vector<16x128xf32>
    %43 = tpu.matmul %41, %42, %cst_33 {dimension_numbers = #tpu.dot_dimension_numbers<[1], [0], [0], [1], [0, 0, 1, 1], [], []>} : vector<16x384xf32>, vector<384x128xf32>, vector<16x128xf32> -> vector<16x128xf32>
    %cst_34 = arith.constant dense<0.000000e+00> : vector<128xf32>
    %44 = vector.multi_reduction <add>, %43, %cst_34 [0] : vector<16x128xf32> to vector<128xf32>
    %45 = vector.shape_cast %44 : vector<128xf32> to vector<1x128xf32>
    %c0_35 = arith.constant 0 : index
    %c0_36 = arith.constant 0 : index
    %46 = vector.load %arg4[%c0_35, %c0_36] : memref<128x128xf32, #tpu.memory_space<vmem>>, vector<128x128xf32>
    %cst_37 = arith.constant dense<0.000000e+00> : vector<1x128xf32>
    %47 = tpu.matmul %45, %46, %cst_37 {dimension_numbers = #tpu.dot_dimension_numbers<[1], [0], [0], [1], [0, 0, 1, 1], [], []>} : vector<1x128xf32>, vector<128x128xf32>, vector<1x128xf32> -> vector<1x128xf32>
    %cst_38 = arith.constant 7.812500e-03 : f32
    %48 = vector.broadcast %cst_38 : f32 to vector<1x128xf32>
    %49 = arith.mulf %47, %48 : vector<1x128xf32>
    %50 = vector.broadcast %49 : vector<1x128xf32> to vector<16x128xf32>
    %51 = arith.subf %43, %50 : vector<16x128xf32>
    %52 = arith.mulf %51, %51 : vector<16x128xf32>
    %cst_39 = arith.constant dense<0.000000e+00> : vector<128xf32>
    %53 = vector.multi_reduction <add>, %52, %cst_39 [0] : vector<16x128xf32> to vector<128xf32>
    %54 = vector.shape_cast %53 : vector<128xf32> to vector<1x128xf32>
    %c0_40 = arith.constant 0 : index
    %c0_41 = arith.constant 0 : index
    %55 = vector.load %arg4[%c0_40, %c0_41] : memref<128x128xf32, #tpu.memory_space<vmem>>, vector<128x128xf32>
    %cst_42 = arith.constant dense<0.000000e+00> : vector<1x128xf32>
    %56 = tpu.matmul %54, %55, %cst_42 {dimension_numbers = #tpu.dot_dimension_numbers<[1], [0], [0], [1], [0, 0, 1, 1], [], []>} : vector<1x128xf32>, vector<128x128xf32>, vector<1x128xf32> -> vector<1x128xf32>
    %cst_43 = arith.constant 7.812500e-03 : f32
    %57 = vector.broadcast %cst_43 : f32 to vector<1x128xf32>
    %58 = arith.mulf %56, %57 : vector<1x128xf32>
    %c0_44 = arith.constant 0 : index
    %c0_45 = arith.constant 0 : index
    %59 = vector.load %arg5[%c0_44, %c0_45] : memref<1x128xf32, #tpu.memory_space<vmem>>, vector<1x128xf32>
    %cst_46 = arith.constant 9.99999974E-6 : f32
    %60 = vector.broadcast %cst_46 : f32 to vector<1x128xf32>
    %61 = arith.addf %58, %60 : vector<1x128xf32>
    %62 = math.rsqrt %61 : vector<1x128xf32>
    %63 = arith.mulf %59, %62 : vector<1x128xf32>
    %c0_47 = arith.constant 0 : index
    %c0_48 = arith.constant 0 : index
    %64 = vector.load %arg6[%c0_47, %c0_48] : memref<1x128xf32, #tpu.memory_space<vmem>>, vector<1x128xf32>
    %65 = arith.mulf %49, %63 : vector<1x128xf32>
    %66 = arith.subf %64, %65 : vector<1x128xf32>
    %67 = vector.broadcast %63 : vector<1x128xf32> to vector<16x128xf32>
    %68 = arith.mulf %43, %67 : vector<16x128xf32>
    %69 = vector.broadcast %66 : vector<1x128xf32> to vector<16x128xf32>
    %70 = arith.addf %68, %69 : vector<16x128xf32>
    %cst_49 = arith.constant 0.000000e+00 : f32
    %71 = vector.broadcast %cst_49 : f32 to vector<16x128xf32>
    %72 = arith.maximumf %70, %71 : vector<16x128xf32>
    %73 = arith.addf %72, %0 : vector<16x128xf32>
    %c0_50 = arith.constant 0 : index
    %c0_51 = arith.constant 0 : index
    %74 = vector.load %arg7[%c0_50, %c0_51] : memref<16x128xf32, #tpu.memory_space<vmem>>, vector<16x128xf32>
    tpu.vector_store %arg7[%c0_50, %c0_51], %73 {strides = array<i32>} : memref<16x128xf32, #tpu.memory_space<vmem>>, vector<16x128xf32>,
    return
  }
}

</mosaic_0001>

<llo_original>
// kernel: tpu_custom_call.1
$region0: #{tpu_custom_call.1}
  #allocation0 [shape = 'u32[]', space=smem, size = 0x4, offset = 0x4, fixed_abs, tag = 'smem constant byte address 0x4 - core index']
  #allocation1 [shape = 'u32[144,128]{1,0:T(1,128)}', space=vmem, size = 0x12000, scoped, tag = 'internal scratch']
  %s0 = inlined_call_operand.hbm [shape: f32[16,128], index: 0, kind: input, shape index: {}]
  %s1 = inlined_call_operand.hbm [shape: f32[16,16], index: 1, kind: input, shape index: {}]
  %s2 = inlined_call_operand.hbm [shape: f32[16,16], index: 2, kind: input, shape index: {}]
  %s3 = inlined_call_operand.hbm [shape: f32[384,128], index: 3, kind: input, shape index: {}]
  %s4 = inlined_call_operand.hbm [shape: f32[128,128], index: 4, kind: input, shape index: {}]
  %s5 = inlined_call_operand.vmem [shape: f32[1,128], index: 5, kind: input, shape index: {}]
  %s6 = inlined_call_operand.vmem [shape: f32[1,128], index: 6, kind: input, shape index: {}]
  %s7 = inlined_call_operand.hbm [shape: f32[16,128], index: 7, kind: output, shape index: {}]
  %s8 = sld [smem:[#allocation0]]
  $region58: #{tpu_custom_call.1} parent=0
    _
  %s10 = ssub.s32 1, %s8
  %s11 = scalar_select 0, %s10, %s8
  $region1: #{tpu_custom_call.1} parent=0
    #allocation2 [shape = 'u8[8192]{0}', space=vmem, size = 0x2000, scoped, tag = 'input window, operand 0, single buffered']
    #allocation3 [shape = 's32[1]{0}', space=sflag, size = 0x4, scoped, tag = 'scoped memory for tpu_custom_call.1']
    #allocation4 [shape = 's32[1]{0}', space=sflag, size = 0x4, scoped, tag = 'scoped memory for tpu_custom_call.1']
    #allocation5 [shape = 'u8[8192]{0}', space=vmem, size = 0x2000, scoped, tag = 'input window, operand 1, single buffered']
    #allocation6 [shape = 's32[1]{0}', space=sflag, size = 0x4, scoped, tag = 'scoped memory for tpu_custom_call.1']
    #allocation7 [shape = 'u8[8192]{0}', space=vmem, size = 0x2000, scoped, tag = 'input window, operand 2, single buffered']
    #allocation8 [shape = 'u8[196608]{0}', space=vmem, size = 0x30000, scoped, tag = 'input window, operand 3, single buffered']
    #allocation9 [shape = 's32[1]{0}', space=sflag, size = 0x4, scoped, tag = 'scoped memory for tpu_custom_call.1']
    #allocation10 [shape = 'u8[65536]{0}', space=vmem, size = 0x10000, scoped, tag = 'input window, operand 4, single buffered']
    #allocation11 [shape = 'u8[8192]{0}', space=vmem, size = 0x2000, scoped, tag = 'output window, operand 0, single buffered']
    %12 = vsyncpa [#allocation3], 0
    %13 = vsyncpa [#allocation6], 0
    %14 = vsyncpa [#allocation9], 0
    %15 = vsyncpa [#allocation4], 0
    // Predicated region
    $region2: #{tpu_custom_call.1} parent=1 // pred_check
      _
    $region3: #{tpu_custom_call.1} parent=1 // pred_check_branch
      %17 = sbr.rel (0) target = $region5
    $region4: #{tpu_custom_call.1} parent=1 // pred_region
      %s19 = ssub.s32 256, 256
      %20 = vsyncadd [#allocation3], %s19
      %s21 = sshll.u32 [#allocation2], 4
      %s22 = int_to_ptr.vmem [resolvable:$true] %s21
      %27 = dma.hbm_to_vmem [thread:$0]  %s0, 256, %s22, [#allocation3], 128, 128, 8
    $region5: #{tpu_custom_call.1} parent=1 // pred_fallthru
      _
    // Predicated region
    $region6: #{tpu_custom_call.1} parent=1 // pred_check
      _
    $region7: #{tpu_custom_call.1} parent=1 // pred_check_branch
      %29 = sbr.rel (0) target = $region9
    $region8: #{tpu_custom_call.1} parent=1 // pred_region
      %s31 = ssub.s32 256, 256
      %32 = vsyncadd [#allocation6], %s31
      %s33 = sshll.u32 [#allocation5], 4
      %s34 = int_to_ptr.vmem [resolvable:$true] %s33
      %39 = dma.hbm_to_vmem [thread:$0]  %s1, 256, %s34, [#allocation6], 128, 128, 8
    $region9: #{tpu_custom_call.1} parent=1 // pred_fallthru
      _
    // Predicated region
    $region10: #{tpu_custom_call.1} parent=1 // pred_check
      _
    $region11: #{tpu_custom_call.1} parent=1 // pred_check_branch
      %41 = sbr.rel (0) target = $region13
    $region12: #{tpu_custom_call.1} parent=1 // pred_region
      %s43 = ssub.s32 256, 256
      %44 = vsyncadd [#allocation6], %s43
      %s45 = sshll.u32 [#allocation7], 4
      %s46 = int_to_ptr.vmem [resolvable:$true] %s45
      %51 = dma.hbm_to_vmem [thread:$0]  %s2, 256, %s46, [#allocation6], 128, 128, 8
    $region13: #{tpu_custom_call.1} parent=1 // pred_fallthru
      _
    // Predicated region
    $region14: #{tpu_custom_call.1} parent=1 // pred_check
      _
    $region15: #{tpu_custom_call.1} parent=1 // pred_check_branch
      %53 = sbr.rel (0) target = $region17
    $region16: #{tpu_custom_call.1} parent=1 // pred_region
      %s55 = ssub.s32 6144, 6144
      %56 = vsyncadd [#allocation9], %s55
      %s57 = sshll.u32 [#allocation8], 4
      %s58 = int_to_ptr.vmem [resolvable:$true] %s57
      %63 = dma.hbm_to_vmem [thread:$0]  %s3, 6144, %s58, [#allocation9], 128, 128, 8
    $region17: #{tpu_custom_call.1} parent=1 // pred_fallthru
      _
    // Predicated region
    $region18: #{tpu_custom_call.1} parent=1 // pred_check
      _
    $region19: #{tpu_custom_call.1} parent=1 // pred_check_branch
      %65 = sbr.rel (0) target = $region21
    $region20: #{tpu_custom_call.1} parent=1 // pred_region
      %s67 = ssub.s32 2048, 2048
      %68 = vsyncadd [#allocation9], %s67
      %s69 = sshll.u32 [#allocation10], 4
      %s70 = int_to_ptr.vmem [resolvable:$true] %s69
      %75 = dma.hbm_to_vmem [thread:$0]  %s4, 2048, %s70, [#allocation9], 128, 128, 8
    $region21: #{tpu_custom_call.1} parent=1 // pred_fallthru
      _
    // Predicated region
    $region22: #{tpu_custom_call.1} parent=1 // pred_check
      _
    $region23: #{tpu_custom_call.1} parent=1 // pred_check_branch
      %77 = sbr.rel (0) target = $region25
    $region24: #{tpu_custom_call.1} parent=1 // pred_region
      _
    $region25: #{tpu_custom_call.1} parent=1 // pred_fallthru
      _
    // Predicated region
    $region26: #{tpu_custom_call.1} parent=1 // pred_check
      _
    $region27: #{tpu_custom_call.1} parent=1 // pred_check_branch
      %79 = sbr.rel (0) target = $region29
    $region28: #{tpu_custom_call.1} parent=1 // pred_region
      _
    $region29: #{tpu_custom_call.1} parent=1 // pred_fallthru
      _
    // Predicated region
    $region30: #{tpu_custom_call.1} parent=1 // pred_check
      _
    $region31: #{tpu_custom_call.1} parent=1 // pred_check_branch
      %81 = sbr.rel (0) target = $region33
    $region32: #{tpu_custom_call.1} parent=1 // pred_region
      %82 = dma.done [#allocation3], 256
    $region33: #{tpu_custom_call.1} parent=1 // pred_fallthru
      _
    // Predicated region
    $region34: #{tpu_custom_call.1} parent=1 // pred_check
      _
    $region35: #{tpu_custom_call.1} parent=1 // pred_check_branch
      %84 = sbr.rel (0) target = $region37
    $region36: #{tpu_custom_call.1} parent=1 // pred_region
      %85 = dma.done [#allocation6], 256
    $region37: #{tpu_custom_call.1} parent=1 // pred_fallthru
      _
    // Predicated region
    $region38: #{tpu_custom_call.1} parent=1 // pred_check
      _
    $region39: #{tpu_custom_call.1} parent=1 // pred_check_branch
      %87 = sbr.rel (0) target = $region41
    $region40: #{tpu_custom_call.1} parent=1 // pred_region
      %88 = dma.done [#allocation6], 256
    $region41: #{tpu_custom_call.1} parent=1 // pred_fallthru
      _
    // Predicated region
    $region42: #{tpu_custom_call.1} parent=1 // pred_check
      _
    $region43: #{tpu_custom_call.1} parent=1 // pred_check_branch
      %90 = sbr.rel (0) target = $region45
    $region44: #{tpu_custom_call.1} parent=1 // pred_region
      %91 = dma.done [#allocation9], 6144
    $region45: #{tpu_custom_call.1} parent=1 // pred_fallthru
      _
    // Predicated region
    $region46: #{tpu_custom_call.1} parent=1 // pred_check
      _
    $region47: #{tpu_custom_call.1} parent=1 // pred_check_branch
      %93 = sbr.rel (0) target = $region49
    $region48: #{tpu_custom_call.1} parent=1 // pred_region
      %94 = dma.done [#allocation9], 2048
    $region49: #{tpu_custom_call.1} parent=1 // pred_fallthru
      _
    %v95 = vld [vmem:[#allocation2] sm:$0xff]
    %v96 = vld [vmem:[#allocation2 + $0x8] sm:$0xff]
    %v97 = vld [vmem:[#allocation5] sm:$0xff]
    %v98 = vld [vmem:[#allocation5 + $0x8] sm:$0xff]
    %vm99 = vcmask 130048
    %v101 = vsel %vm99, %v97, 0
    %v104 = vsel %vm99, %v98, 0
    %106 = vmatprep.subr.mxu0 0.0
    %107 = vmatpush1.msra.mxu0 0.0
    %108 = vmatprep.subr.mxu0 0.0
    %109 = vmatpush1.msra.mxu0 0.0
    %110 = vmatprep.subr.mxu0 0.0
    %111 = vmatpush1.msra.mxu0 0.0
    %112 = vmatprep.subr.mxu0 0.0
    %113 = vmatpush1.msra.mxu0 0.0
    %114 = vmatprep.subr.mxu0 0.0
    %115 = vmatpush1.msra.mxu0 0.0
    %116 = vmatprep.subr.mxu0 0.0
    %117 = vmatpush1.msra.mxu0 0.0
    %118 = vmatprep.subr.mxu0 0.0
    %119 = vmatpush1.msra.mxu0 0.0
    %120 = vmatprep.subr.mxu0 0.0
    %121 = vmatpush1.msra.mxu0 0.0
    %122 = vmatprep.subr.mxu0 0.0
    %123 = vmatpush1.msra.mxu0 0.0
    %124 = vmatprep.subr.mxu0 0.0
    %125 = vmatpush1.msra.mxu0 0.0
    %126 = vmatprep.subr.mxu0 0.0
    %127 = vmatpush1.msra.mxu0 0.0
    %128 = vmatprep.subr.mxu0 0.0
    %129 = vmatpush1.msra.mxu0 0.0
    %130 = vmatprep.subr.mxu0 0.0
    %131 = vmatpush1.msra.mxu0 0.0
    %132 = vmatprep.subr.mxu0 0.0
    %133 = vmatpush1.msra.mxu0 0.0
    %134 = vmatprep.subr.mxu0 0.0
    %135 = vmatpush1.msra.mxu0 %v96
    %136 = vmatprep.subr.mxu0 0.0
    %137 = vmatpush1.msra.mxu0 %v95
    %138 = vmatprep.subr.mxu0 0.0
    %139 = vmatpush2.msra.mxu0 0.0
    %140 = vmatprep.subr.mxu0 0.0
    %141 = vmatpush2.msra.mxu0 0.0
    %142 = vmatprep.subr.mxu0 0.0
    %143 = vmatpush2.msra.mxu0 0.0
    %144 = vmatprep.subr.mxu0 0.0
    %145 = vmatpush2.msra.mxu0 0.0
    %146 = vmatprep.subr.mxu0 0.0
    %147 = vmatpush2.msra.mxu0 0.0
    %148 = vmatprep.subr.mxu0 0.0
    %149 = vmatpush2.msra.mxu0 0.0
    %150 = vmatprep.subr.mxu0 0.0
    %151 = vmatpush2.msra.mxu0 0.0
    %152 = vmatprep.subr.mxu0 0.0
    %153 = vmatpush2.msra.mxu0 0.0
    %154 = vmatprep.subr.mxu0 0.0
    %155 = vmatpush2.msra.mxu0 0.0
    %156 = vmatprep.subr.mxu0 0.0
    %157 = vmatpush2.msra.mxu0 0.0
    %158 = vmatprep.subr.mxu0 0.0
    %159 = vmatpush2.msra.mxu0 0.0
    %160 = vmatprep.subr.mxu0 0.0
    %161 = vmatpush2.msra.mxu0 0.0
    %162 = vmatprep.subr.mxu0 0.0
    %163 = vmatpush2.msra.mxu0 0.0
    %164 = vmatprep.subr.mxu0 0.0
    %165 = vmatpush2.msra.mxu0 0.0
    %166 = vmatprep.subr.mxu0 0.0
    %167 = vmatpush2.msra.mxu0 0.0
    %168 = vmatprep.subr.mxu0 0.0
    %169 = vmatpush2.msra.mxu0 0.0
    %170 = vmatprep.mubr.f32.mxu0 0.0
    %171 = vmatmul.mubr.f32.gmra.mxu0 %v101
    %v172 = vpop.f32.mrf.mxu0
    %v173 = vadd.f32 0.0, %v172
    %v174 = vpop.f32.mrf.mxu0
    %175 = vmatprep.mubr.f32.mxu0 0.0
    %176 = vmatmul.mubr.f32.gmra.mxu0 %v104
    %v177 = vpop.f32.mrf.mxu0
    %v178 = vadd.f32 0.0, %v177
    %v179 = vpop.f32.mrf.mxu0
    %180 = vdwg.mxu0
    %v181 = vld [vmem:[#allocation7] sm:$0xff]
    %v182 = vld [vmem:[#allocation7 + $0x8] sm:$0xff]
    %v184 = vsel %vm99, %v181, 0
    %v187 = vsel %vm99, %v182, 0
    %189 = vmatprep.subr.mxu0 0.0
    %190 = vmatpush1.msra.mxu0 0.0
    %191 = vmatprep.subr.mxu0 0.0
    %192 = vmatpush1.msra.mxu0 0.0
    %193 = vmatprep.subr.mxu0 0.0
    %194 = vmatpush1.msra.mxu0 0.0
    %195 = vmatprep.subr.mxu0 0.0
    %196 = vmatpush1.msra.mxu0 0.0
    %197 = vmatprep.subr.mxu0 0.0
    %198 = vmatpush1.msra.mxu0 0.0
    %199 = vmatprep.subr.mxu0 0.0
    %200 = vmatpush1.msra.mxu0 0.0
    %201 = vmatprep.subr.mxu0 0.0
    %202 = vmatpush1.msra.mxu0 0.0
    %203 = vmatprep.subr.mxu0 0.0
    %204 = vmatpush1.msra.mxu0 0.0
    %205 = vmatprep.subr.mxu0 0.0
    %206 = vmatpush1.msra.mxu0 0.0
    %207 = vmatprep.subr.mxu0 0.0
    %208 = vmatpush1.msra.mxu0 0.0
    %209 = vmatprep.subr.mxu0 0.0
    %210 = vmatpush1.msra.mxu0 0.0
    %211 = vmatprep.subr.mxu0 0.0
    %212 = vmatpush1.msra.mxu0 0.0
    %213 = vmatprep.subr.mxu0 0.0
    %214 = vmatpush1.msra.mxu0 0.0
    %215 = vmatprep.subr.mxu0 0.0
    %216 = vmatpush1.msra.mxu0 0.0
    %217 = vmatprep.subr.mxu0 0.0
    %218 = vmatpush1.msra.mxu0 %v96
    %219 = vmatprep.subr.mxu0 0.0
    %220 = vmatpush1.msra.mxu0 %v95
    %221 = vmatprep.subr.mxu0 0.0
    %222 = vmatpush2.msra.mxu0 0.0
    %223 = vmatprep.subr.mxu0 0.0
    %224 = vmatpush2.msra.mxu0 0.0
    %225 = vmatprep.subr.mxu0 0.0
    %226 = vmatpush2.msra.mxu0 0.0
    %227 = vmatprep.subr.mxu0 0.0
    %228 = vmatpush2.msra.mxu0 0.0
    %229 = vmatprep.subr.mxu0 0.0
    %230 = vmatpush2.msra.mxu0 0.0
    %231 = vmatprep.subr.mxu0 0.0
    %232 = vmatpush2.msra.mxu0 0.0
    %233 = vmatprep.subr.mxu0 0.0
    %234 = vmatpush2.msra.mxu0 0.0
    %235 = vmatprep.subr.mxu0 0.0
    %236 = vmatpush2.msra.mxu0 0.0
    %237 = vmatprep.subr.mxu0 0.0
    %238 = vmatpush2.msra.mxu0 0.0
    %239 = vmatprep.subr.mxu0 0.0
    %240 = vmatpush2.msra.mxu0 0.0
    %241 = vmatprep.subr.mxu0 0.0
    %242 = vmatpush2.msra.mxu0 0.0
    %243 = vmatprep.subr.mxu0 0.0
    %244 = vmatpush2.msra.mxu0 0.0
    %245 = vmatprep.subr.mxu0 0.0
    %246 = vmatpush2.msra.mxu0 0.0
    %247 = vmatprep.subr.mxu0 0.0
    %248 = vmatpush2.msra.mxu0 0.0
    %249 = vmatprep.subr.mxu0 0.0
    %250 = vmatpush2.msra.mxu0 0.0
    %251 = vmatprep.subr.mxu0 0.0
    %252 = vmatpush2.msra.mxu0 0.0
    %253 = vmatprep.mubr.f32.mxu0 0.0
    %254 = vmatmul.mubr.f32.gmra.mxu0 %v184
    %v255 = vpop.f32.mrf.mxu0
    %v256 = vadd.f32 0.0, %v255
    %v257 = vpop.f32.mrf.mxu0
    %258 = vmatprep.mubr.f32.mxu0 0.0
    %259 = vmatmul.mubr.f32.gmra.mxu0 %v187
    %v260 = vpop.f32.mrf.mxu0
    %v261 = vadd.f32 0.0, %v260
    %v262 = vpop.f32.mrf.mxu0
    %263 = vdwg.mxu0
    %v264 = vld [vmem:[#allocation8] sm:$0xff]
    %v265 = vld [vmem:[#allocation8 + $0x8] sm:$0xff]
    %v266 = vld [vmem:[#allocation8 + $0x10] sm:$0xff]
    %v267 = vld [vmem:[#allocation8 + $0x18] sm:$0xff]
    %v268 = vld [vmem:[#allocation8 + $0x20] sm:$0xff]
    %v269 = vld [vmem:[#allocation8 + $0x28] sm:$0xff]
    %v270 = vld [vmem:[#allocation8 + $0x30] sm:$0xff]
    %v271 = vld [vmem:[#allocation8 + $0x38] sm:$0xff]
    %v272 = vld [vmem:[#allocation8 + $0x40] sm:$0xff]
    %v273 = vld [vmem:[#allocation8 + $0x48] sm:$0xff]
    %v274 = vld [vmem:[#allocation8 + $0x50] sm:$0xff]
    %v275 = vld [vmem:[#allocation8 + $0x58] sm:$0xff]
    %v276 = vld [vmem:[#allocation8 + $0x60] sm:$0xff]
    %v277 = vld [vmem:[#allocation8 + $0x68] sm:$0xff]
    %v278 = vld [vmem:[#allocation8 + $0x70] sm:$0xff]
    %v279 = vld [vmem:[#allocation8 + $0x78] sm:$0xff]
    %v280 = vld [vmem:[#allocation8 + $0x80] sm:$0xff]
    %v281 = vld [vmem:[#allocation8 + $0x88] sm:$0xff]
    %v282 = vld [vmem:[#allocation8 + $0x90] sm:$0xff]
    %v283 = vld [vmem:[#allocation8 + $0x98] sm:$0xff]
    %v284 = vld [vmem:[#allocation8 + $0xa0] sm:$0xff]
    %v285 = vld [vmem:[#allocation8 + $0xa8] sm:$0xff]
    %v286 = vld [vmem:[#allocation8 + $0xb0] sm:$0xff]
    %v287 = vld [vmem:[#allocation8 + $0xb8] sm:$0xff]
    %v288 = vld [vmem:[#allocation8 + $0xc0] sm:$0xff]
    %v289 = vld [vmem:[#allocation8 + $0xc8] sm:$0xff]
    %v290 = vld [vmem:[#allocation8 + $0xd0] sm:$0xff]
    %v291 = vld [vmem:[#allocation8 + $0xd8] sm:$0xff]
    %v292 = vld [vmem:[#allocation8 + $0xe0] sm:$0xff]
    %v293 = vld [vmem:[#allocation8 + $0xe8] sm:$0xff]
    %v294 = vld [vmem:[#allocation8 + $0xf0] sm:$0xff]
    %v295 = vld [vmem:[#allocation8 + $0xf8] sm:$0xff]
    %v296 = vld [vmem:[#allocation8 + $0x100] sm:$0xff]
    %v297 = vld [vmem:[#allocation8 + $0x108] sm:$0xff]
    %v298 = vld [vmem:[#allocation8 + $0x110] sm:$0xff]
    %v299 = vld [vmem:[#allocation8 + $0x118] sm:$0xff]
    %v300 = vld [vmem:[#allocation8 + $0x120] sm:$0xff]
    %v301 = vld [vmem:[#allocation8 + $0x128] sm:$0xff]
    %v302 = vld [vmem:[#allocation8 + $0x130] sm:$0xff]
    %v303 = vld [vmem:[#allocation8 + $0x138] sm:$0xff]
    %v304 = vld [vmem:[#allocation8 + $0x140] sm:$0xff]
    %v305 = vld [vmem:[#allocation8 + $0x148] sm:$0xff]
    %v306 = vld [vmem:[#allocation8 + $0x150] sm:$0xff]
    %v307 = vld [vmem:[#allocation8 + $0x158] sm:$0xff]
    %v308 = vld [vmem:[#allocation8 + $0x160] sm:$0xff]
    %v309 = vld [vmem:[#allocation8 + $0x168] sm:$0xff]
    %v310 = vld [vmem:[#allocation8 + $0x170] sm:$0xff]
    %v311 = vld [vmem:[#allocation8 + $0x178] sm:$0xff]
    %312 = vmatprep.subr.mxu0 0.0
    %313 = vmatpush1.msra.mxu0 %v279
    %314 = vmatprep.subr.mxu0 0.0
    %315 = vmatpush1.msra.mxu0 %v278
    %316 = vmatprep.subr.mxu0 0.0
    %317 = vmatpush1.msra.mxu0 %v277
    %318 = vmatprep.subr.mxu0 0.0
    %319 = vmatpush1.msra.mxu0 %v276
    %320 = vmatprep.subr.mxu0 0.0
    %321 = vmatpush1.msra.mxu0 %v275
    %322 = vmatprep.subr.mxu0 0.0
    %323 = vmatpush1.msra.mxu0 %v274
    %324 = vmatprep.subr.mxu0 0.0
    %325 = vmatpush1.msra.mxu0 %v273
    %326 = vmatprep.subr.mxu0 0.0
    %327 = vmatpush1.msra.mxu0 %v272
    %328 = vmatprep.subr.mxu0 0.0
    %329 = vmatpush1.msra.mxu0 %v271
    %330 = vmatprep.subr.mxu0 0.0
    %331 = vmatpush1.msra.mxu0 %v270
    %332 = vmatprep.subr.mxu0 0.0
    %333 = vmatpush1.msra.mxu0 %v269
    %334 = vmatprep.subr.mxu0 0.0
    %335 = vmatpush1.msra.mxu0 %v268
    %336 = vmatprep.subr.mxu0 0.0
    %337 = vmatpush1.msra.mxu0 %v267
    %338 = vmatprep.subr.mxu0 0.0
    %339 = vmatpush1.msra.mxu0 %v266
    %340 = vmatprep.subr.mxu0 0.0
    %341 = vmatpush1.msra.mxu0 %v265
    %342 = vmatprep.subr.mxu0 0.0
    %343 = vmatpush1.msra.mxu0 %v264
    %344 = vmatprep.subr.mxu0 0.0
    %345 = vmatpush2.msra.mxu0 %v295
    %346 = vmatprep.subr.mxu0 0.0
    %347 = vmatpush2.msra.mxu0 %v294
    %348 = vmatprep.subr.mxu0 0.0
    %349 = vmatpush2.msra.mxu0 %v293
    %350 = vmatprep.subr.mxu0 0.0
    %351 = vmatpush2.msra.mxu0 %v292
    %352 = vmatprep.subr.mxu0 0.0
    %353 = vmatpush2.msra.mxu0 %v291
    %354 = vmatprep.subr.mxu0 0.0
    %355 = vmatpush2.msra.mxu0 %v290
    %356 = vmatprep.subr.mxu0 0.0
    %357 = vmatpush2.msra.mxu0 %v289
    %358 = vmatprep.subr.mxu0 0.0
    %359 = vmatpush2.msra.mxu0 %v288
    %360 = vmatprep.subr.mxu0 0.0
    %361 = vmatpush2.msra.mxu0 %v287
    %362 = vmatprep.subr.mxu0 0.0
    %363 = vmatpush2.msra.mxu0 %v286
    %364 = vmatprep.subr.mxu0 0.0
    %365 = vmatpush2.msra.mxu0 %v285
    %366 = vmatprep.subr.mxu0 0.0
    %367 = vmatpush2.msra.mxu0 %v284
    %368 = vmatprep.subr.mxu0 0.0
    %369 = vmatpush2.msra.mxu0 %v283
    %370 = vmatprep.subr.mxu0 0.0
    %371 = vmatpush2.msra.mxu0 %v282
    %372 = vmatprep.subr.mxu0 0.0
    %373 = vmatpush2.msra.mxu0 %v281
    %374 = vmatprep.subr.mxu0 0.0
    %375 = vmatpush2.msra.mxu0 %v280
    %376 = vmatprep.mubr.f32.mxu0 %v95
    %377 = vmatmul.mubr.f32.gmra.mxu0 %v173
    %v378 = vpop.f32.mrf.mxu0
    %v379 = vadd.f32 0.0, %v378
    %v380 = vpop.f32.mrf.mxu0
    %381 = vmatprep.mubr.f32.mxu0 %v96
    %382 = vmatmul.mubr.f32.gmra.mxu0 %v178
    %v383 = vpop.f32.mrf.mxu0
    %v384 = vadd.f32 0.0, %v383
    %v385 = vpop.f32.mrf.mxu0
    %386 = vdwg.mxu0
    %387 = vmatprep.subr.mxu0 0.0
    %388 = vmatpush1.msra.mxu0 %v311
    %389 = vmatprep.subr.mxu0 0.0
    %390 = vmatpush1.msra.mxu0 %v310
    %391 = vmatprep.subr.mxu0 0.0
    %392 = vmatpush1.msra.mxu0 %v309
    %393 = vmatprep.subr.mxu0 0.0
    %394 = vmatpush1.msra.mxu0 %v308
    %395 = vmatprep.subr.mxu0 0.0
    %396 = vmatpush1.msra.mxu0 %v307
    %397 = vmatprep.subr.mxu0 0.0
    %398 = vmatpush1.msra.mxu0 %v306
    %399 = vmatprep.subr.mxu0 0.0
    %400 = vmatpush1.msra.mxu0 %v305
    %401 = vmatprep.subr.mxu0 0.0
    %402 = vmatpush1.msra.mxu0 %v304
    %403 = vmatprep.subr.mxu0 0.0
    %404 = vmatpush1.msra.mxu0 %v303
    %405 = vmatprep.subr.mxu0 0.0
    %406 = vmatpush1.msra.mxu0 %v302
    %407 = vmatprep.subr.mxu0 0.0
    %408 = vmatpush1.msra.mxu0 %v301
    %409 = vmatprep.subr.mxu0 0.0
    %410 = vmatpush1.msra.mxu0 %v300
    %411 = vmatprep.subr.mxu0 0.0
    %412 = vmatpush1.msra.mxu0 %v299
    %413 = vmatprep.subr.mxu0 0.0
    %414 = vmatpush1.msra.mxu0 %v298
    %415 = vmatprep.subr.mxu0 0.0
    %416 = vmatpush1.msra.mxu0 %v297
    %417 = vmatprep.subr.mxu0 0.0
    %418 = vmatpush1.msra.mxu0 %v296
    %419 = vmatprep.subr.mxu0 0.0
    %420 = vmatpush2.msra.mxu0 0.0
    %421 = vmatprep.subr.mxu0 0.0
    %422 = vmatpush2.msra.mxu0 0.0
    %423 = vmatprep.subr.mxu0 0.0
    %424 = vmatpush2.msra.mxu0 0.0
    %425 = vmatprep.subr.mxu0 0.0
    %426 = vmatpush2.msra.mxu0 0.0
    %427 = vmatprep.subr.mxu0 0.0
    %428 = vmatpush2.msra.mxu0 0.0
    %429 = vmatprep.subr.mxu0 0.0
    %430 = vmatpush2.msra.mxu0 0.0
    %431 = vmatprep.subr.mxu0 0.0
    %432 = vmatpush2.msra.mxu0 0.0
    %433 = vmatprep.subr.mxu0 0.0
    %434 = vmatpush2.msra.mxu0 0.0
    %435 = vmatprep.subr.mxu0 0.0
    %436 = vmatpush2.msra.mxu0 0.0
    %437 = vmatprep.subr.mxu0 0.0
    %438 = vmatpush2.msra.mxu0 0.0
    %439 = vmatprep.subr.mxu0 0.0
    %440 = vmatpush2.msra.mxu0 0.0
    %441 = vmatprep.subr.mxu0 0.0
    %442 = vmatpush2.msra.mxu0 0.0
    %443 = vmatprep.subr.mxu0 0.0
    %444 = vmatpush2.msra.mxu0 0.0
    %445 = vmatprep.subr.mxu0 0.0
    %446 = vmatpush2.msra.mxu0 0.0
    %447 = vmatprep.subr.mxu0 0.0
    %448 = vmatpush2.msra.mxu0 0.0
    %449 = vmatprep.subr.mxu0 0.0
    %450 = vmatpush2.msra.mxu0 0.0
    %451 = vmatprep.mubr.f32.mxu0 0.0
    %452 = vmatmul.mubr.f32.gmra.mxu0 %v256
    %v453 = vpop.f32.mrf.mxu0
    %v454 = vadd.f32 %v379, %v453
    %v455 = vpop.f32.mrf.mxu0
    %456 = vmatprep.mubr.f32.mxu0 0.0
    %457 = vmatmul.mubr.f32.gmra.mxu0 %v261
    %v458 = vpop.f32.mrf.mxu0
    %v459 = vadd.f32 %v384, %v458
    %v460 = vpop.f32.mrf.mxu0
    %461 = vdwg.mxu0
    %v462 = vadd.f32 %v454, %v459
    %v463 = vrot.slane %v462, 4
    %v464 = vadd.f32 %v462, %v463
    %v465 = vrot.slane %v464, 2
    %v466 = vadd.f32 %v464, %v465
    %v467 = vrot.slane %v466, 1
    %v468 = vadd.f32 %v466, %v467
    %v469 = vld [vmem:[#allocation10] sm:$0xff]
    %v470 = vld [vmem:[#allocation10 + $0x8] sm:$0xff]
    %v471 = vld [vmem:[#allocation10 + $0x10] sm:$0xff]
    %v472 = vld [vmem:[#allocation10 + $0x18] sm:$0xff]
    %v473 = vld [vmem:[#allocation10 + $0x20] sm:$0xff]
    %v474 = vld [vmem:[#allocation10 + $0x28] sm:$0xff]
    %v475 = vld [vmem:[#allocation10 + $0x30] sm:$0xff]
    %v476 = vld [vmem:[#allocation10 + $0x38] sm:$0xff]
    %v477 = vld [vmem:[#allocation10 + $0x40] sm:$0xff]
    %v478 = vld [vmem:[#allocation10 + $0x48] sm:$0xff]
    %v479 = vld [vmem:[#allocation10 + $0x50] sm:$0xff]
    %v480 = vld [vmem:[#allocation10 + $0x58] sm:$0xff]
    %v481 = vld [vmem:[#allocation10 + $0x60] sm:$0xff]
    %v482 = vld [vmem:[#allocation10 + $0x68] sm:$0xff]
    %v483 = vld [vmem:[#allocation10 + $0x70] sm:$0xff]
    %v484 = vld [vmem:[#allocation10 + $0x78] sm:$0xff]
    %485 = vmatprep.subr.mxu0 0.0
    %486 = vmatpush1.msra.mxu0 %v484
    %487 = vmatprep.subr.mxu0 0.0
    %488 = vmatpush1.msra.mxu0 %v483
    %489 = vmatprep.subr.mxu0 0.0
    %490 = vmatpush1.msra.mxu0 %v482
    %491 = vmatprep.subr.mxu0 0.0
    %492 = vmatpush1.msra.mxu0 %v481
    %493 = vmatprep.subr.mxu0 0.0
    %494 = vmatpush1.msra.mxu0 %v480
    %495 = vmatprep.subr.mxu0 0.0
    %496 = vmatpush1.msra.mxu0 %v479
    %497 = vmatprep.subr.mxu0 0.0
    %498 = vmatpush1.msra.mxu0 %v478
    %499 = vmatprep.subr.mxu0 0.0
    %500 = vmatpush1.msra.mxu0 %v477
    %501 = vmatprep.subr.mxu0 0.0
    %502 = vmatpush1.msra.mxu0 %v476
    %503 = vmatprep.subr.mxu0 0.0
    %504 = vmatpush1.msra.mxu0 %v475
    %505 = vmatprep.subr.mxu0 0.0
    %506 = vmatpush1.msra.mxu0 %v474
    %507 = vmatprep.subr.mxu0 0.0
    %508 = vmatpush1.msra.mxu0 %v473
    %509 = vmatprep.subr.mxu0 0.0
    %510 = vmatpush1.msra.mxu0 %v472
    %511 = vmatprep.subr.mxu0 0.0
    %512 = vmatpush1.msra.mxu0 %v471
    %513 = vmatprep.subr.mxu0 0.0
    %514 = vmatpush1.msra.mxu0 %v470
    %515 = vmatprep.subr.mxu0 0.0
    %516 = vmatpush1.msra.mxu0 %v469
    %517 = vmatprep.subr.mxu0 0.0
    %518 = vmatpush2.msra.mxu0 0.0
    %519 = vmatprep.subr.mxu0 0.0
    %520 = vmatpush2.msra.mxu0 0.0
    %521 = vmatprep.subr.mxu0 0.0
    %522 = vmatpush2.msra.mxu0 0.0
    %523 = vmatprep.subr.mxu0 0.0
    %524 = vmatpush2.msra.mxu0 0.0
    %525 = vmatprep.subr.mxu0 0.0
    %526 = vmatpush2.msra.mxu0 0.0
    %527 = vmatprep.subr.mxu0 0.0
    %528 = vmatpush2.msra.mxu0 0.0
    %529 = vmatprep.subr.mxu0 0.0
    %530 = vmatpush2.msra.mxu0 0.0
    %531 = vmatprep.subr.mxu0 0.0
    %532 = vmatpush2.msra.mxu0 0.0
    %533 = vmatprep.subr.mxu0 0.0
    %534 = vmatpush2.msra.mxu0 0.0
    %535 = vmatprep.subr.mxu0 0.0
    %536 = vmatpush2.msra.mxu0 0.0
    %537 = vmatprep.subr.mxu0 0.0
    %538 = vmatpush2.msra.mxu0 0.0
    %539 = vmatprep.subr.mxu0 0.0
    %540 = vmatpush2.msra.mxu0 0.0
    %541 = vmatprep.subr.mxu0 0.0
    %542 = vmatpush2.msra.mxu0 0.0
    %543 = vmatprep.subr.mxu0 0.0
    %544 = vmatpush2.msra.mxu0 0.0
    %545 = vmatprep.subr.mxu0 0.0
    %546 = vmatpush2.msra.mxu0 0.0
    %547 = vmatprep.subr.mxu0 0.0
    %548 = vmatpush2.msra.mxu0 0.0
    %549 = vmatprep.mubr.f32.mxu0 0.0
    %550 = vmatmul.mubr.f32.gmra.mxu0 %v468
    %v551 = vpop.f32.mrf.mxu0
    %v552 = vadd.f32 0.0, %v551
    %v553 = vpop.f32.mrf.mxu0
    %554 = vdwg.mxu0
    %v555 = vmul.f32 %v552, 0.0078125
    %v556 = vlaneseq
    %v557 = vshrl.u32 %v556, 7
    %v558 = vsub.s32 0, %v557
    %v559 = vrot.slane %v555, %v558
    %v560 = vsub.f32 %v454, %v559
    %v561 = vsub.f32 %v459, %v559
    %v562 = vmul.f32 %v560, %v560
    %v563 = vmul.f32 %v561, %v561
    %v564 = vadd.f32 %v562, %v563
    %v565 = vrot.slane %v564, 4
    %v566 = vadd.f32 %v564, %v565
    %v567 = vrot.slane %v566, 2
    %v568 = vadd.f32 %v566, %v567
    %v569 = vrot.slane %v568, 1
    %v570 = vadd.f32 %v568, %v569
    %571 = vmatprep.subr.mxu0 0.0
    %572 = vmatpush1.msra.mxu0 %v484
    %573 = vmatprep.subr.mxu0 0.0
    %574 = vmatpush1.msra.mxu0 %v483
    %575 = vmatprep.subr.mxu0 0.0
    %576 = vmatpush1.msra.mxu0 %v482
    %577 = vmatprep.subr.mxu0 0.0
    %578 = vmatpush1.msra.mxu0 %v481
    %579 = vmatprep.subr.mxu0 0.0
    %580 = vmatpush1.msra.mxu0 %v480
    %581 = vmatprep.subr.mxu0 0.0
    %582 = vmatpush1.msra.mxu0 %v479
    %583 = vmatprep.subr.mxu0 0.0
    %584 = vmatpush1.msra.mxu0 %v478
    %585 = vmatprep.subr.mxu0 0.0
    %586 = vmatpush1.msra.mxu0 %v477
    %587 = vmatprep.subr.mxu0 0.0
    %588 = vmatpush1.msra.mxu0 %v476
    %589 = vmatprep.subr.mxu0 0.0
    %590 = vmatpush1.msra.mxu0 %v475
    %591 = vmatprep.subr.mxu0 0.0
    %592 = vmatpush1.msra.mxu0 %v474
    %593 = vmatprep.subr.mxu0 0.0
    %594 = vmatpush1.msra.mxu0 %v473
    %595 = vmatprep.subr.mxu0 0.0
    %596 = vmatpush1.msra.mxu0 %v472
    %597 = vmatprep.subr.mxu0 0.0
    %598 = vmatpush1.msra.mxu0 %v471
    %599 = vmatprep.subr.mxu0 0.0
    %600 = vmatpush1.msra.mxu0 %v470
    %601 = vmatprep.subr.mxu0 0.0
    %602 = vmatpush1.msra.mxu0 %v469
    %603 = vmatprep.subr.mxu0 0.0
    %604 = vmatpush2.msra.mxu0 0.0
    %605 = vmatprep.subr.mxu0 0.0
    %606 = vmatpush2.msra.mxu0 0.0
    %607 = vmatprep.subr.mxu0 0.0
    %608 = vmatpush2.msra.mxu0 0.0
    %609 = vmatprep.subr.mxu0 0.0
    %610 = vmatpush2.msra.mxu0 0.0
    %611 = vmatprep.subr.mxu0 0.0
    %612 = vmatpush2.msra.mxu0 0.0
    %613 = vmatprep.subr.mxu0 0.0
    %614 = vmatpush2.msra.mxu0 0.0
    %615 = vmatprep.subr.mxu0 0.0
    %616 = vmatpush2.msra.mxu0 0.0
    %617 = vmatprep.subr.mxu0 0.0
    %618 = vmatpush2.msra.mxu0 0.0
    %619 = vmatprep.subr.mxu0 0.0
    %620 = vmatpush2.msra.mxu0 0.0
    %621 = vmatprep.subr.mxu0 0.0
    %622 = vmatpush2.msra.mxu0 0.0
    %623 = vmatprep.subr.mxu0 0.0
    %624 = vmatpush2.msra.mxu0 0.0
    %625 = vmatprep.subr.mxu0 0.0
    %626 = vmatpush2.msra.mxu0 0.0
    %627 = vmatprep.subr.mxu0 0.0
    %628 = vmatpush2.msra.mxu0 0.0
    %629 = vmatprep.subr.mxu0 0.0
    %630 = vmatpush2.msra.mxu0 0.0
    %631 = vmatprep.subr.mxu0 0.0
    %632 = vmatpush2.msra.mxu0 0.0
    %633 = vmatprep.subr.mxu0 0.0
    %634 = vmatpush2.msra.mxu0 0.0
    %635 = vmatprep.mubr.f32.mxu0 0.0
    %636 = vmatmul.mubr.f32.gmra.mxu0 %v570
    %v637 = vpop.f32.mrf.mxu0
    %v638 = vadd.f32 0.0, %v637
    %v639 = vpop.f32.mrf.mxu0
    %640 = vdwg.mxu0
    %v641 = vmul.f32 %v638, 0.0078125
    %v642 = vld [vmem:[%s5] sm:$0x1]
    %v643 = vadd.f32 %v641, 1e-05
    %v644 = vrsqrt.pop %v643
    %v645 = vmul.f32 %v642, %v644
    %v646 = vld [vmem:[%s6] sm:$0x1]
    %v647 = vmul.f32 %v555, %v645
    %v648 = vsub.f32 %v646, %v647
    %v650 = vlaneseq
    %v651 = vshrl.u32 %v650, 7
    %v652 = vsub.s32 0, %v651
    %v653 = vrot.slane %v645, %v652
    %v655 = vmul.f32 %v454, %v653
    %v656 = vmul.f32 %v459, %v653
    %v658 = vlaneseq
    %v659 = vshrl.u32 %v658, 7
    %v660 = vsub.s32 0, %v659
    %v661 = vrot.slane %v648, %v660
    %v663 = vadd.f32 %v655, %v661
    %v664 = vadd.f32 %v656, %v661
    %v665 = vmax.f32 %v663, 0.0
    %v666 = vmax.f32 %v664, 0.0
    %667 = vmatprep.subr.mxu0 0.0
    %668 = vmatpush1.msra.mxu0 0.0
    %669 = vmatprep.subr.mxu0 0.0
    %670 = vmatpush1.msra.mxu0 0.0
    %671 = vmatprep.subr.mxu0 0.0
    %672 = vmatpush1.msra.mxu0 0.0
    %673 = vmatprep.subr.mxu0 0.0
    %674 = vmatpush1.msra.mxu0 0.0
    %675 = vmatprep.subr.mxu0 0.0
    %676 = vmatpush1.msra.mxu0 0.0
    %677 = vmatprep.subr.mxu0 0.0
    %678 = vmatpush1.msra.mxu0 0.0
    %679 = vmatprep.subr.mxu0 0.0
    %680 = vmatpush1.msra.mxu0 0.0
    %681 = vmatprep.subr.mxu0 0.0
    %682 = vmatpush1.msra.mxu0 0.0
    %683 = vmatprep.subr.mxu0 0.0
    %684 = vmatpush1.msra.mxu0 0.0
    %685 = vmatprep.subr.mxu0 0.0
    %686 = vmatpush1.msra.mxu0 0.0
    %687 = vmatprep.subr.mxu0 0.0
    %688 = vmatpush1.msra.mxu0 0.0
    %689 = vmatprep.subr.mxu0 0.0
    %690 = vmatpush1.msra.mxu0 0.0
    %691 = vmatprep.subr.mxu0 0.0
    %692 = vmatpush1.msra.mxu0 0.0
    %693 = vmatprep.subr.mxu0 0.0
    %694 = vmatpush1.msra.mxu0 0.0
    %695 = vmatprep.subr.mxu0 0.0
    %696 = vmatpush1.msra.mxu0 %v666
    %697 = vmatprep.subr.mxu0 0.0
    %698 = vmatpush1.msra.mxu0 %v665
    %699 = vmatprep.subr.mxu0 0.0
    %700 = vmatpush2.msra.mxu0 0.0
    %701 = vmatprep.subr.mxu0 0.0
    %702 = vmatpush2.msra.mxu0 0.0
    %703 = vmatprep.subr.mxu0 0.0
    %704 = vmatpush2.msra.mxu0 0.0
    %705 = vmatprep.subr.mxu0 0.0
    %706 = vmatpush2.msra.mxu0 0.0
    %707 = vmatprep.subr.mxu0 0.0
    %708 = vmatpush2.msra.mxu0 0.0
    %709 = vmatprep.subr.mxu0 0.0
    %710 = vmatpush2.msra.mxu0 0.0
    %711 = vmatprep.subr.mxu0 0.0
    %712 = vmatpush2.msra.mxu0 0.0
    %713 = vmatprep.subr.mxu0 0.0
    %714 = vmatpush2.msra.mxu0 0.0
    %715 = vmatprep.subr.mxu0 0.0
    %716 = vmatpush2.msra.mxu0 0.0
    %717 = vmatprep.subr.mxu0 0.0
    %718 = vmatpush2.msra.mxu0 0.0
    %719 = vmatprep.subr.mxu0 0.0
    %720 = vmatpush2.msra.mxu0 0.0
    %721 = vmatprep.subr.mxu0 0.0
    %722 = vmatpush2.msra.mxu0 0.0
    %723 = vmatprep.subr.mxu0 0.0
    %724 = vmatpush2.msra.mxu0 0.0
    %725 = vmatprep.subr.mxu0 0.0
    %726 = vmatpush2.msra.mxu0 0.0
    %727 = vmatprep.subr.mxu0 0.0
    %728 = vmatpush2.msra.mxu0 0.0
    %729 = vmatprep.subr.mxu0 0.0
    %730 = vmatpush2.msra.mxu0 0.0
    %731 = vmatprep.mubr.f32.mxu0 0.0
    %732 = vmatmul.mubr.f32.gmra.mxu0 %v101
    %v733 = vpop.f32.mrf.mxu0
    %v734 = vadd.f32 0.0, %v733
    %v735 = vpop.f32.mrf.mxu0
    %736 = vmatprep.mubr.f32.mxu0 0.0
    %737 = vmatmul.mubr.f32.gmra.mxu0 %v104
    %v738 = vpop.f32.mrf.mxu0
    %v739 = vadd.f32 0.0, %v738
    %v740 = vpop.f32.mrf.mxu0
    %741 = vdwg.mxu0
    %742 = vmatprep.subr.mxu0 0.0
    %743 = vmatpush1.msra.mxu0 0.0
    %744 = vmatprep.subr.mxu0 0.0
    %745 = vmatpush1.msra.mxu0 0.0
    %746 = vmatprep.subr.mxu0 0.0
    %747 = vmatpush1.msra.mxu0 0.0
    %748 = vmatprep.subr.mxu0 0.0
    %749 = vmatpush1.msra.mxu0 0.0
    %750 = vmatprep.subr.mxu0 0.0
    %751 = vmatpush1.msra.mxu0 0.0
    %752 = vmatprep.subr.mxu0 0.0
    %753 = vmatpush1.msra.mxu0 0.0
    %754 = vmatprep.subr.mxu0 0.0
    %755 = vmatpush1.msra.mxu0 0.0
    %756 = vmatprep.subr.mxu0 0.0
    %757 = vmatpush1.msra.mxu0 0.0
    %758 = vmatprep.subr.mxu0 0.0
    %759 = vmatpush1.msra.mxu0 0.0
    %760 = vmatprep.subr.mxu0 0.0
    %761 = vmatpush1.msra.mxu0 0.0
    %762 = vmatprep.subr.mxu0 0.0
    %763 = vmatpush1.msra.mxu0 0.0
    %764 = vmatprep.subr.mxu0 0.0
    %765 = vmatpush1.msra.mxu0 0.0
    %766 = vmatprep.subr.mxu0 0.0
    %767 = vmatpush1.msra.mxu0 0.0
    %768 = vmatprep.subr.mxu0 0.0
    %769 = vmatpush1.msra.mxu0 0.0
    %770 = vmatprep.subr.mxu0 0.0
    %771 = vmatpush1.msra.mxu0 %v666
    %772 = vmatprep.subr.mxu0 0.0
    %773 = vmatpush1.msra.mxu0 %v665
    %774 = vmatprep.subr.mxu0 0.0
    %775 = vmatpush2.msra.mxu0 0.0
    %776 = vmatprep.subr.mxu0 0.0
    %777 = vmatpush2.msra.mxu0 0.0
    %778 = vmatprep.subr.mxu0 0.0
    %779 = vmatpush2.msra.mxu0 0.0
    %780 = vmatprep.subr.mxu0 0.0
    %781 = vmatpush2.msra.mxu0 0.0
    %782 = vmatprep.subr.mxu0 0.0
    %783 = vmatpush2.msra.mxu0 0.0
    %784 = vmatprep.subr.mxu0 0.0
    %785 = vmatpush2.msra.mxu0 0.0
    %786 = vmatprep.subr.mxu0 0.0
    %787 = vmatpush2.msra.mxu0 0.0
    %788 = vmatprep.subr.mxu0 0.0
    %789 = vmatpush2.msra.mxu0 0.0
    %790 = vmatprep.subr.mxu0 0.0
    %791 = vmatpush2.msra.mxu0 0.0
    %792 = vmatprep.subr.mxu0 0.0
    %793 = vmatpush2.msra.mxu0 0.0
    %794 = vmatprep.subr.mxu0 0.0
    %795 = vmatpush2.msra.mxu0 0.0
    %796 = vmatprep.subr.mxu0 0.0
    %797 = vmatpush2.msra.mxu0 0.0
    %798 = vmatprep.subr.mxu0 0.0
    %799 = vmatpush2.msra.mxu0 0.0
    %800 = vmatprep.subr.mxu0 0.0
    %801 = vmatpush2.msra.mxu0 0.0
    %802 = vmatprep.subr.mxu0 0.0
    %803 = vmatpush2.msra.mxu0 0.0
    %804 = vmatprep.subr.mxu0 0.0
    %805 = vmatpush2.msra.mxu0 0.0
    %806 = vmatprep.mubr.f32.mxu0 0.0
    %807 = vmatmul.mubr.f32.gmra.mxu0 %v184
    %v808 = vpop.f32.mrf.mxu0
    %v809 = vadd.f32 0.0, %v808
    %v810 = vpop.f32.mrf.mxu0
    %811 = vmatprep.mubr.f32.mxu0 0.0
    %812 = vmatmul.mubr.f32.gmra.mxu0 %v187
    %v813 = vpop.f32.mrf.mxu0
    %v814 = vadd.f32 0.0, %v813
    %v815 = vpop.f32.mrf.mxu0
    %816 = vdwg.mxu0
    %817 = vmatprep.subr.mxu0 0.0
    %818 = vmatpush1.msra.mxu0 %v279
    %819 = vmatprep.subr.mxu0 0.0
    %820 = vmatpush1.msra.mxu0 %v278
    %821 = vmatprep.subr.mxu0 0.0
    %822 = vmatpush1.msra.mxu0 %v277
    %823 = vmatprep.subr.mxu0 0.0
    %824 = vmatpush1.msra.mxu0 %v276
    %825 = vmatprep.subr.mxu0 0.0
    %826 = vmatpush1.msra.mxu0 %v275
    %827 = vmatprep.subr.mxu0 0.0
    %828 = vmatpush1.msra.mxu0 %v274
    %829 = vmatprep.subr.mxu0 0.0
    %830 = vmatpush1.msra.mxu0 %v273
    %831 = vmatprep.subr.mxu0 0.0
    %832 = vmatpush1.msra.mxu0 %v272
    %833 = vmatprep.subr.mxu0 0.0
    %834 = vmatpush1.msra.mxu0 %v271
    %835 = vmatprep.subr.mxu0 0.0
    %836 = vmatpush1.msra.mxu0 %v270
    %837 = vmatprep.subr.mxu0 0.0
    %838 = vmatpush1.msra.mxu0 %v269
    %839 = vmatprep.subr.mxu0 0.0
    %840 = vmatpush1.msra.mxu0 %v268
    %841 = vmatprep.subr.mxu0 0.0
    %842 = vmatpush1.msra.mxu0 %v267
    %843 = vmatprep.subr.mxu0 0.0
    %844 = vmatpush1.msra.mxu0 %v266
    %845 = vmatprep.subr.mxu0 0.0
    %846 = vmatpush1.msra.mxu0 %v265
    %847 = vmatprep.subr.mxu0 0.0
    %848 = vmatpush1.msra.mxu0 %v264
    %849 = vmatprep.subr.mxu0 0.0
    %850 = vmatpush2.msra.mxu0 %v295
    %851 = vmatprep.subr.mxu0 0.0
    %852 = vmatpush2.msra.mxu0 %v294
    %853 = vmatprep.subr.mxu0 0.0
    %854 = vmatpush2.msra.mxu0 %v293
    %855 = vmatprep.subr.mxu0 0.0
    %856 = vmatpush2.msra.mxu0 %v292
    %857 = vmatprep.subr.mxu0 0.0
    %858 = vmatpush2.msra.mxu0 %v291
    %859 = vmatprep.subr.mxu0 0.0
    %860 = vmatpush2.msra.mxu0 %v290
    %861 = vmatprep.subr.mxu0 0.0
    %862 = vmatpush2.msra.mxu0 %v289
    %863 = vmatprep.subr.mxu0 0.0
    %864 = vmatpush2.msra.mxu0 %v288
    %865 = vmatprep.subr.mxu0 0.0
    %866 = vmatpush2.msra.mxu0 %v287
    %867 = vmatprep.subr.mxu0 0.0
    %868 = vmatpush2.msra.mxu0 %v286
    %869 = vmatprep.subr.mxu0 0.0
    %870 = vmatpush2.msra.mxu0 %v285
    %871 = vmatprep.subr.mxu0 0.0
    %872 = vmatpush2.msra.mxu0 %v284
    %873 = vmatprep.subr.mxu0 0.0
    %874 = vmatpush2.msra.mxu0 %v283
    %875 = vmatprep.subr.mxu0 0.0
    %876 = vmatpush2.msra.mxu0 %v282
    %877 = vmatprep.subr.mxu0 0.0
    %878 = vmatpush2.msra.mxu0 %v281
    %879 = vmatprep.subr.mxu0 0.0
    %880 = vmatpush2.msra.mxu0 %v280
    %881 = vmatprep.mubr.f32.mxu0 %v665
    %882 = vmatmul.mubr.f32.gmra.mxu0 %v734
    %v883 = vpop.f32.mrf.mxu0
    %v884 = vadd.f32 0.0, %v883
    %v885 = vpop.f32.mrf.mxu0
    %886 = vmatprep.mubr.f32.mxu0 %v666
    %887 = vmatmul.mubr.f32.gmra.mxu0 %v739
    %v888 = vpop.f32.mrf.mxu0
    %v889 = vadd.f32 0.0, %v888
    %v890 = vpop.f32.mrf.mxu0
    %891 = vdwg.mxu0
    %892 = vmatprep.subr.mxu0 0.0
    %893 = vmatpush1.msra.mxu0 %v311
    %894 = vmatprep.subr.mxu0 0.0
    %895 = vmatpush1.msra.mxu0 %v310
    %896 = vmatprep.subr.mxu0 0.0
    %897 = vmatpush1.msra.mxu0 %v309
    %898 = vmatprep.subr.mxu0 0.0
    %899 = vmatpush1.msra.mxu0 %v308
    %900 = vmatprep.subr.mxu0 0.0
    %901 = vmatpush1.msra.mxu0 %v307
    %902 = vmatprep.subr.mxu0 0.0
    %903 = vmatpush1.msra.mxu0 %v306
    %904 = vmatprep.subr.mxu0 0.0
    %905 = vmatpush1.msra.mxu0 %v305
    %906 = vmatprep.subr.mxu0 0.0
    %907 = vmatpush1.msra.mxu0 %v304
    %908 = vmatprep.subr.mxu0 0.0
    %909 = vmatpush1.msra.mxu0 %v303
    %910 = vmatprep.subr.mxu0 0.0
    %911 = vmatpush1.msra.mxu0 %v302
    %912 = vmatprep.subr.mxu0 0.0
    %913 = vmatpush1.msra.mxu0 %v301
    %914 = vmatprep.subr.mxu0 0.0
    %915 = vmatpush1.msra.mxu0 %v300
    %916 = vmatprep.subr.mxu0 0.0
    %917 = vmatpush1.msra.mxu0 %v299
    %918 = vmatprep.subr.mxu0 0.0
    %919 = vmatpush1.msra.mxu0 %v298
    %920 = vmatprep.subr.mxu0 0.0
    %921 = vmatpush1.msra.mxu0 %v297
    %922 = vmatprep.subr.mxu0 0.0
    %923 = vmatpush1.msra.mxu0 %v296
    %924 = vmatprep.subr.mxu0 0.0
    %925 = vmatpush2.msra.mxu0 0.0
    %926 = vmatprep.subr.mxu0 0.0
    %927 = vmatpush2.msra.mxu0 0.0
    %928 = vmatprep.subr.mxu0 0.0
    %929 = vmatpush2.msra.mxu0 0.0
    %930 = vmatprep.subr.mxu0 0.0
    %931 = vmatpush2.msra.mxu0 0.0
    %932 = vmatprep.subr.mxu0 0.0
    %933 = vmatpush2.msra.mxu0 0.0
    %934 = vmatprep.subr.mxu0 0.0
    %935 = vmatpush2.msra.mxu0 0.0
    %936 = vmatprep.subr.mxu0 0.0
    %937 = vmatpush2.msra.mxu0 0.0
    %938 = vmatprep.subr.mxu0 0.0
    %939 = vmatpush2.msra.mxu0 0.0
    %940 = vmatprep.subr.mxu0 0.0
    %941 = vmatpush2.msra.mxu0 0.0
    %942 = vmatprep.subr.mxu0 0.0
    %943 = vmatpush2.msra.mxu0 0.0
    %944 = vmatprep.subr.mxu0 0.0
    %945 = vmatpush2.msra.mxu0 0.0
    %946 = vmatprep.subr.mxu0 0.0
    %947 = vmatpush2.msra.mxu0 0.0
    %948 = vmatprep.subr.mxu0 0.0
    %949 = vmatpush2.msra.mxu0 0.0
    %950 = vmatprep.subr.mxu0 0.0
    %951 = vmatpush2.msra.mxu0 0.0
    %952 = vmatprep.subr.mxu0 0.0
    %953 = vmatpush2.msra.mxu0 0.0
    %954 = vmatprep.subr.mxu0 0.0
    %955 = vmatpush2.msra.mxu0 0.0
    %956 = vmatprep.mubr.f32.mxu0 0.0
    %957 = vmatmul.mubr.f32.gmra.mxu0 %v809
    %v958 = vpop.f32.mrf.mxu0
    %v959 = vadd.f32 %v884, %v958
    %v960 = vpop.f32.mrf.mxu0
    %961 = vmatprep.mubr.f32.mxu0 0.0
    %962 = vmatmul.mubr.f32.gmra.mxu0 %v814
    %v963 = vpop.f32.mrf.mxu0
    %v964 = vadd.f32 %v889, %v963
    %v965 = vpop.f32.mrf.mxu0
    %966 = vdwg.mxu0
    %v967 = vadd.f32 %v959, %v964
    %v968 = vrot.slane %v967, 4
    %v969 = vadd.f32 %v967, %v968
    %v970 = vrot.slane %v969, 2
    %v971 = vadd.f32 %v969, %v970
    %v972 = vrot.slane %v971, 1
    %v973 = vadd.f32 %v971, %v972
    %974 = vmatprep.subr.mxu0 0.0
    %975 = vmatpush1.msra.mxu0 %v484
    %976 = vmatprep.subr.mxu0 0.0
    %977 = vmatpush1.msra.mxu0 %v483
    %978 = vmatprep.subr.mxu0 0.0
    %979 = vmatpush1.msra.mxu0 %v482
    %980 = vmatprep.subr.mxu0 0.0
    %981 = vmatpush1.msra.mxu0 %v481
    %982 = vmatprep.subr.mxu0 0.0
    %983 = vmatpush1.msra.mxu0 %v480
    %984 = vmatprep.subr.mxu0 0.0
    %985 = vmatpush1.msra.mxu0 %v479
    %986 = vmatprep.subr.mxu0 0.0
    %987 = vmatpush1.msra.mxu0 %v478
    %988 = vmatprep.subr.mxu0 0.0
    %989 = vmatpush1.msra.mxu0 %v477
    %990 = vmatprep.subr.mxu0 0.0
    %991 = vmatpush1.msra.mxu0 %v476
    %992 = vmatprep.subr.mxu0 0.0
    %993 = vmatpush1.msra.mxu0 %v475
    %994 = vmatprep.subr.mxu0 0.0
    %995 = vmatpush1.msra.mxu0 %v474
    %996 = vmatprep.subr.mxu0 0.0
    %997 = vmatpush1.msra.mxu0 %v473
    %998 = vmatprep.subr.mxu0 0.0
    %999 = vmatpush1.msra.mxu0 %v472
    %1000 = vmatprep.subr.mxu0 0.0
    %1001 = vmatpush1.msra.mxu0 %v471
    %1002 = vmatprep.subr.mxu0 0.0
    %1003 = vmatpush1.msra.mxu0 %v470
    %1004 = vmatprep.subr.mxu0 0.0
    %1005 = vmatpush1.msra.mxu0 %v469
    %1006 = vmatprep.subr.mxu0 0.0
    %1007 = vmatpush2.msra.mxu0 0.0
    %1008 = vmatprep.subr.mxu0 0.0
    %1009 = vmatpush2.msra.mxu0 0.0
    %1010 = vmatprep.subr.mxu0 0.0
    %1011 = vmatpush2.msra.mxu0 0.0
    %1012 = vmatprep.subr.mxu0 0.0
    %1013 = vmatpush2.msra.mxu0 0.0
    %1014 = vmatprep.subr.mxu0 0.0
    %1015 = vmatpush2.msra.mxu0 0.0
    %1016 = vmatprep.subr.mxu0 0.0
    %1017 = vmatpush2.msra.mxu0 0.0
    %1018 = vmatprep.subr.mxu0 0.0
    %1019 = vmatpush2.msra.mxu0 0.0
    %1020 = vmatprep.subr.mxu0 0.0
    %1021 = vmatpush2.msra.mxu0 0.0
    %1022 = vmatprep.subr.mxu0 0.0
    %1023 = vmatpush2.msra.mxu0 0.0
    %1024 = vmatprep.subr.mxu0 0.0
    %1025 = vmatpush2.msra.mxu0 0.0
    %1026 = vmatprep.subr.mxu0 0.0
    %1027 = vmatpush2.msra.mxu0 0.0
    %1028 = vmatprep.subr.mxu0 0.0
    %1029 = vmatpush2.msra.mxu0 0.0
    %1030 = vmatprep.subr.mxu0 0.0
    %1031 = vmatpush2.msra.mxu0 0.0
    %1032 = vmatprep.subr.mxu0 0.0
    %1033 = vmatpush2.msra.mxu0 0.0
    %1034 = vmatprep.subr.mxu0 0.0
    %1035 = vmatpush2.msra.mxu0 0.0
    %1036 = vmatprep.subr.mxu0 0.0
    %1037 = vmatpush2.msra.mxu0 0.0
    %1038 = vmatprep.mubr.f32.mxu0 0.0
    %1039 = vmatmul.mubr.f32.gmra.mxu0 %v973
    %v1040 = vpop.f32.mrf.mxu0
    %v1041 = vadd.f32 0.0, %v1040
    %v1042 = vpop.f32.mrf.mxu0
    %1043 = vdwg.mxu0
    %v1044 = vmul.f32 %v1041, 0.0078125
    %v1045 = vlaneseq
    %v1046 = vshrl.u32 %v1045, 7
    %v1047 = vsub.s32 0, %v1046
    %v1048 = vrot.slane %v1044, %v1047
    %v1049 = vsub.f32 %v959, %v1048
    %v1050 = vsub.f32 %v964, %v1048
    %v1051 = vmul.f32 %v1049, %v1049
    %v1052 = vmul.f32 %v1050, %v1050
    %v1053 = vadd.f32 %v1051, %v1052
    %v1054 = vrot.slane %v1053, 4
    %v1055 = vadd.f32 %v1053, %v1054
    %v1056 = vrot.slane %v1055, 2
    %v1057 = vadd.f32 %v1055, %v1056
    %v1058 = vrot.slane %v1057, 1
    %v1059 = vadd.f32 %v1057, %v1058
    %1060 = vmatprep.subr.mxu0 0.0
    %1061 = vmatpush1.msra.mxu0 %v484
    %1062 = vmatprep.subr.mxu0 0.0
    %1063 = vmatpush1.msra.mxu0 %v483
    %1064 = vmatprep.subr.mxu0 0.0
    %1065 = vmatpush1.msra.mxu0 %v482
    %1066 = vmatprep.subr.mxu0 0.0
    %1067 = vmatpush1.msra.mxu0 %v481
    %1068 = vmatprep.subr.mxu0 0.0
    %1069 = vmatpush1.msra.mxu0 %v480
    %1070 = vmatprep.subr.mxu0 0.0
    %1071 = vmatpush1.msra.mxu0 %v479
    %1072 = vmatprep.subr.mxu0 0.0
    %1073 = vmatpush1.msra.mxu0 %v478
    %1074 = vmatprep.subr.mxu0 0.0
    %1075 = vmatpush1.msra.mxu0 %v477
    %1076 = vmatprep.subr.mxu0 0.0
    %1077 = vmatpush1.msra.mxu0 %v476
    %1078 = vmatprep.subr.mxu0 0.0
    %1079 = vmatpush1.msra.mxu0 %v475
    %1080 = vmatprep.subr.mxu0 0.0
    %1081 = vmatpush1.msra.mxu0 %v474
    %1082 = vmatprep.subr.mxu0 0.0
    %1083 = vmatpush1.msra.mxu0 %v473
    %1084 = vmatprep.subr.mxu0 0.0
    %1085 = vmatpush1.msra.mxu0 %v472
    %1086 = vmatprep.subr.mxu0 0.0
    %1087 = vmatpush1.msra.mxu0 %v471
    %1088 = vmatprep.subr.mxu0 0.0
    %1089 = vmatpush1.msra.mxu0 %v470
    %1090 = vmatprep.subr.mxu0 0.0
    %1091 = vmatpush1.msra.mxu0 %v469
    %1092 = vmatprep.subr.mxu0 0.0
    %1093 = vmatpush2.msra.mxu0 0.0
    %1094 = vmatprep.subr.mxu0 0.0
    %1095 = vmatpush2.msra.mxu0 0.0
    %1096 = vmatprep.subr.mxu0 0.0
    %1097 = vmatpush2.msra.mxu0 0.0
    %1098 = vmatprep.subr.mxu0 0.0
    %1099 = vmatpush2.msra.mxu0 0.0
    %1100 = vmatprep.subr.mxu0 0.0
    %1101 = vmatpush2.msra.mxu0 0.0
    %1102 = vmatprep.subr.mxu0 0.0
    %1103 = vmatpush2.msra.mxu0 0.0
    %1104 = vmatprep.subr.mxu0 0.0
    %1105 = vmatpush2.msra.mxu0 0.0
    %1106 = vmatprep.subr.mxu0 0.0
    %1107 = vmatpush2.msra.mxu0 0.0
    %1108 = vmatprep.subr.mxu0 0.0
    %1109 = vmatpush2.msra.mxu0 0.0
    %1110 = vmatprep.subr.mxu0 0.0
    %1111 = vmatpush2.msra.mxu0 0.0
    %1112 = vmatprep.subr.mxu0 0.0
    %1113 = vmatpush2.msra.mxu0 0.0
    %1114 = vmatprep.subr.mxu0 0.0
    %1115 = vmatpush2.msra.mxu0 0.0
    %1116 = vmatprep.subr.mxu0 0.0
    %1117 = vmatpush2.msra.mxu0 0.0
    %1118 = vmatprep.subr.mxu0 0.0
    %1119 = vmatpush2.msra.mxu0 0.0
    %1120 = vmatprep.subr.mxu0 0.0
    %1121 = vmatpush2.msra.mxu0 0.0
    %1122 = vmatprep.subr.mxu0 0.0
    %1123 = vmatpush2.msra.mxu0 0.0
    %1124 = vmatprep.mubr.f32.mxu0 0.0
    %1125 = vmatmul.mubr.f32.gmra.mxu0 %v1059
    %v1126 = vpop.f32.mrf.mxu0
    %v1127 = vadd.f32 0.0, %v1126
    %v1128 = vpop.f32.mrf.mxu0
    %1129 = vdwg.mxu0
    %v1130 = vmul.f32 %v1127, 0.0078125
    %v1131 = vadd.f32 %v1130, 1e-05
    %v1132 = vrsqrt.pop %v1131
    %v1133 = vmul.f32 %v642, %v1132
    %v1134 = vmul.f32 %v1044, %v1133
    %v1135 = vsub.f32 %v646, %v1134
    %v1137 = vlaneseq
    %v1138 = vshrl.u32 %v1137, 7
    %v1139 = vsub.s32 0, %v1138
    %v1140 = vrot.slane %v1133, %v1139
    %v1142 = vmul.f32 %v959, %v1140
    %v1143 = vmul.f32 %v964, %v1140
    %v1145 = vlaneseq
    %v1146 = vshrl.u32 %v1145, 7
    %v1147 = vsub.s32 0, %v1146
    %v1148 = vrot.slane %v1135, %v1147
    %v1150 = vadd.f32 %v1142, %v1148
    %v1151 = vadd.f32 %v1143, %v1148
    %v1152 = vmax.f32 %v1150, 0.0
    %v1153 = vmax.f32 %v1151, 0.0
    %v1154 = vadd.f32 %v1152, %v95
    %v1155 = vadd.f32 %v1153, %v96
    %1156 = vst [vmem:[#allocation11] sm:$0xff] %v1154
    %1157 = vst [vmem:[#allocation11 + $0x8] sm:$0xff] %v1155
    // Predicated region
    $region50: #{tpu_custom_call.1} parent=1 // pred_check
      _
    $region51: #{tpu_custom_call.1} parent=1 // pred_check_branch
      %1159 = sbr.rel (0) target = $region53
    $region52: #{tpu_custom_call.1} parent=1 // pred_region
      %s1161 = ssub.s32 256, 256
      %1162 = vsyncadd [#allocation4], %s1161
      %s1163 = sshll.u32 [#allocation11], 4
      %s1164 = int_to_ptr.vmem [resolvable:$true] %s1163
      %1169 = dma.vmem_to_hbm [thread:$0]  %s1164, 256, %s7, [#allocation4], 128, 128, 8
    $region53: #{tpu_custom_call.1} parent=1 // pred_fallthru
      _
    // Predicated region
    $region54: #{tpu_custom_call.1} parent=1 // pred_check
      _
    $region55: #{tpu_custom_call.1} parent=1 // pred_check_branch
      %1171 = sbr.rel (0) target = $region57
    $region56: #{tpu_custom_call.1} parent=1 // pred_region
      %1172 = dma.done [#allocation4], 256
    $region57: #{tpu_custom_call.1} parent=1 // pred_fallthru
      _
    %1173 = vsyncpa [#allocation3], 1
    %1174 = vsyncpa [#allocation6], 1
    %1175 = vsyncpa [#allocation9], 1
    %1176 = vsyncpa [#allocation4], 1

</llo_original>
